<compile_context>
chip_gen: v6e
topology: v6e:2x2x1
jax: 0.10.0
libtpu: 0.0.40
codegen_flags: <defaults>
</compile_context>

<pallas_src>
import functools
import math

import jax
import jax.numpy as jnp
from jax import lax
from jax.experimental import pallas as pl
from jax.experimental.pallas import tpu as pltpu


def _round_up(x: int, m: int) -> int:
    return ((x + m - 1) // m) * m


@functools.lru_cache(maxsize=None)
def _vmem_capacity_bytes() -> int:
    """Physical VMEM per core (128 MiB on v5e/v6e, 64 MiB on v7x)."""
    try:
        cap = int(pltpu.get_tpu_info().vmem_capacity_bytes)
        if cap > 0:
            return cap
    except Exception:
        pass
    return 64 << 20  # conservative (v7x-sized) fallback


# --------------------------------------------------------------------------------------
# Kernels
# --------------------------------------------------------------------------------------

def _load_table_once(w_hbm_ref, w_vmem, sem):
    """One-shot HBM -> VMEM copy of the whole table on the first grid step.

    The scratch persists across grid steps, so the table lives in VMEM exactly once
    (single-buffered), which is the goal of the Buffered(1) review item. The grid axis
    must be sequential ("arbitrary") so every later step sees the loaded table.
    """
    @pl.when(pl.program_id(0) == 0)
    def _():
        cp = pltpu.make_async_copy(w_hbm_ref, w_vmem, sem.at[0])
        cp.start()
        cp.wait()


def _embedding_onehot_kernel(ids_ref, w_hbm_ref, out_ref, w_vmem, sem):
    """Small-vocab resident path: gather on the MXU via an exact one-hot matmul.

    ids_ref : (1, 1, T) int32 in VMEM (per-tile block)
    w_hbm   : (V, D) table in HBM (copied once into w_vmem)
    out_ref : (T, D) dense, sublane-aligned output tile
    """
    _load_table_once(w_hbm_ref, w_vmem, sem)

    tokens = out_ref.shape[0]
    vocab = w_vmem.shape[0]

    ids_row = ids_ref[0, :, :]                                        # (1, T), lanes = tokens
    # onehot[v, t] = (v == ids[t]); broadcast of the lane vector across sublanes is free.
    onehot = (lax.broadcasted_iota(jnp.int32, (vocab, tokens), 0) == ids_row)
    onehot = onehot.astype(w_vmem.dtype)                              # exactly 0.0 / 1.0
    # (V, T)^T @ (V, D) -> (T, D) on the MXU. HIGHEST keeps f32 row selection exact.
    out_ref[...] = jnp.einsum(
        "vt,vd->td", onehot, w_vmem[...],
        preferred_element_type=jnp.float32,
        precision=lax.Precision.HIGHEST,
    ).astype(out_ref.dtype)


def _embedding_resident_copy_kernel(ids_ref, w_hbm_ref, out_ref, w_vmem, sem):
    """Medium-vocab resident path: table in VMEM, per-row copies into the (T, D) tile.

    ids_ref : (N_pad,) int32 in SMEM (scalar prefetch) -- rows are scalar DMA-style
              indices, so they must live in SMEM, not VMEM.
    """
    _load_table_once(w_hbm_ref, w_vmem, sem)

    tokens = out_ref.shape[0]
    base = pl.program_id(0) * tokens

    def body(t, carry):
        row = ids_ref[base + t]                                       # scalar read, SMEM
        out_ref[pl.ds(t, 1), :] = w_vmem[pl.ds(row, 1), :]
        return carry

    lax.fori_loop(0, tokens, body, 0, unroll=8)


def _embedding_hbm_gather_kernel(ids_ref, w_hbm_ref, out_ref, sem):
    """Large-vocab path: per-row DMAs straight from HBM into the (T, D) output tile.

    All T row DMAs are issued up front (deep in-flight window), then drained with
    fixed-slice wait descriptors (the wait only needs the semaphore and the per-copy
    byte count), so no SMEM read ever follows a .wait().
    """
    tokens = out_ref.shape[0]
    base = pl.program_id(0) * tokens

    def issue(t, carry):
        row = ids_ref[base + t]
        pltpu.make_async_copy(
            w_hbm_ref.at[pl.ds(row, 1), :],
            out_ref.at[pl.ds(t, 1), :],
            sem.at[0],
        ).start()
        return carry

    lax.fori_loop(0, tokens, issue, 0, unroll=8)

    def drain(t, carry):
        pltpu.make_async_copy(
            w_hbm_ref.at[pl.ds(0, 1), :],      # same (1, D) byte count as every issue
            out_ref.at[pl.ds(0, 1), :],
            sem.at[0],
        ).wait()
        return carry

    lax.fori_loop(0, tokens, drain, 0, unroll=8)


# --------------------------------------------------------------------------------------
# Wrapper
# --------------------------------------------------------------------------------------

def _bitcast_rows_to_u32(w):
    """(V, D) sub-32-bit table -> (V, D*itemsize/4) uint32 view (sublane-aligned rows)."""
    V, D = w.shape
    pack = 4 // jnp.dtype(w.dtype).itemsize
    return lax.bitcast_convert_type(w.reshape(V, D // pack, pack), jnp.uint32)


def _bitcast_u32_to_rows(x, dtype, d_native):
    n = x.shape[0]
    return lax.bitcast_convert_type(x, dtype).reshape(n, d_native)


@functools.partial(
    jax.jit,
    static_argnames=("target_tile_bytes", "max_tokens_per_tile",
                     "onehot_vocab_limit", "resident_table_bytes"),
)
def embedding_lookup(ids: jax.Array, weight: jax.Array, *,
                     target_tile_bytes: int = 1 << 20,
                     max_tokens_per_tile: int = 2048,
                     onehot_vocab_limit: int = 2048,
                     resident_table_bytes: int | None = None) -> jax.Array:
    """Pallas equivalent of `weight[ids]` (PyTorch nn.Embedding forward).

    Out-of-range ids are clamped to [0, V-1] (PyTorch raises); clamping keeps every
    row access in bounds. `resident_table_bytes=None` picks a generation-aware
    threshold from the physical VMEM size.
    """
    V, D = (int(s) for s in weight.shape)
    idx_shape = tuple(int(s) for s in ids.shape)
    N = math.prod(idx_shape) if idx_shape else 1
    if N == 0:
        return jnp.zeros(idx_shape + (D,), weight.dtype)

    itemsize = jnp.dtype(weight.dtype).itemsize
    # rows per native (8, 128)-word tile: 8 for f32, 16 for bf16, 32 for int8/fp8
    sublane = max(8, 32 // max(itemsize, 1))

    ids_flat = jnp.clip(ids.reshape(-1).astype(jnp.int32), 0, V - 1)

    table_bytes = V * D * itemsize
    row_bytes = D * itemsize

    # ---- generation-aware VMEM budgets (v5e/v6e: 128 MiB, v7x: 64 MiB) ----------------
    vmem_cap = _vmem_capacity_bytes()
    # Never request the full physical VMEM: leave >= 8 MiB / 15% for Mosaic scratch,
    # double-buffered tiles and semaphores (critical on v7x).
    vmem_limit_cap = max(32 << 20, min(vmem_cap - (8 << 20), int(vmem_cap * 0.85)))
    # Resident-table threshold: ~82 MiB on 128-MiB parts, ~33 MiB on v7x.
    auto_resident_limit = max(0, int(0.9 * vmem_limit_cap) - (16 << 20))
    resident_limit = (auto_resident_limit if resident_table_bytes is None
                      else int(resident_table_bytes))

    resident = table_bytes <= resident_limit
    use_onehot = (resident
                  and V <= onehot_vocab_limit
                  and jnp.issubdtype(weight.dtype, jnp.floating))

    # ---- token tile: ~target_tile_bytes per (T, D) output tile (scales with D) --------
    T = max(sublane, min(max_tokens_per_tile, target_tile_bytes // max(row_bytes, 1)))
    if use_onehot:
        T = min(T, max(sublane, (4 << 20) // (V * 4)))   # keep (V, T) one-hot <= ~4 MiB
    T = _round_up(T, sublane)
    T = min(T, _round_up(N, sublane))
    N_pad = _round_up(N, T)
    num_tiles = N_pad // T
    if N_pad != N:
        ids_flat = jnp.pad(ids_flat, (0, N_pad - N))     # pad with id 0 (a valid row)
    out_tile_bytes = T * row_bytes

    if use_onehot:
        # -------- Path 1: small vocab, table resident in VMEM, MXU one-hot gather ------
        ids_tiles = ids_flat.reshape(num_tiles, 1, T)
        vmem_need = (table_bytes + 2 * out_tile_bytes + 2 * T * 4
                     + 2 * T * V * 4 + (4 << 20))
        out_flat = pl.pallas_call(
            _embedding_onehot_kernel,
            out_shape=jax.ShapeDtypeStruct((N_pad, D), weight.dtype),
            grid_spec=pltpu.PrefetchScalarGridSpec(
                num_scalar_prefetch=0,
                grid=(num_tiles,),
                in_specs=[
                    pl.BlockSpec((1, 1, T), lambda i: (i, 0, 0)),   # ids tile (VMEM)
                    pl.BlockSpec(memory_space=pl.ANY),              # table stays in HBM
                ],
                out_specs=pl.BlockSpec((T, D), lambda i: (i, 0)),
                scratch_shapes=[
                    pltpu.VMEM((V, D), weight.dtype),               # resident table (1x)
                    pltpu.SemaphoreType.DMA((1,)),
                ],
            ),
            compiler_params=pltpu.CompilerParams(
                # sequential grid: step 0 loads the table for every later step
                dimension_semantics=("arbitrary",),
                vmem_limit_bytes=int(min(max(vmem_need, 32 << 20), vmem_limit_cap)),
            ),
        )(ids_tiles, weight)

    elif resident:
        # -------- Path 2: medium vocab, table resident in VMEM, per-row copies ---------
        if itemsize < 4 and D % (4 // itemsize) == 0:
            pack = 4 // itemsize                       # u32 view -> sublane-aligned rows
            w_kernel = _bitcast_rows_to_u32(weight)
            Dk = D // pack
        else:
            pack = 1
            w_kernel = weight
            Dk = D
        vmem_need = table_bytes + 2 * out_tile_bytes + (4 << 20)
        out_flat = pl.pallas_call(
            _embedding_resident_copy_kernel,
            out_shape=jax.ShapeDtypeStruct((N_pad, Dk), w_kernel.dtype),
            grid_spec=pltpu.PrefetchScalarGridSpec(
                num_scalar_prefetch=1,                              # ids -> SMEM scalars
                grid=(num_tiles,),
                in_specs=[pl.BlockSpec(memory_space=pl.ANY)],       # table stays in HBM
                out_specs=pl.BlockSpec((T, Dk), lambda i, ids: (i, 0)),
                scratch_shapes=[
                    pltpu.VMEM((V, Dk), w_kernel.dtype),            # resident table (1x)
                    pltpu.SemaphoreType.DMA((1,)),
                ],
            ),
            compiler_params=pltpu.CompilerParams(
                dimension_semantics=("arbitrary",),
                vmem_limit_bytes=int(min(max(vmem_need, 32 << 20), vmem_limit_cap)),
            ),
        )(ids_flat, w_kernel)
        if pack > 1:
            out_flat = _bitcast_u32_to_rows(out_flat, weight.dtype, D)

    else:
        # -------- Path 3: large vocab, per-row HBM DMAs into the output tile -----------
        vmem_need = 2 * out_tile_bytes + (4 << 20)
        out_flat = pl.pallas_call(
            _embedding_hbm_gather_kernel,
            out_shape=jax.ShapeDtypeStruct((N_pad, D), weight.dtype),
            grid_spec=pltpu.PrefetchScalarGridSpec(
                num_scalar_prefetch=1,                              # ids -> SMEM scalars
                grid=(num_tiles,),
                in_specs=[pl.BlockSpec(memory_space=pl.ANY)],       # raw HBM table ref
                out_specs=pl.BlockSpec((T, D), lambda i, ids: (i, 0)),
                scratch_shapes=[pltpu.SemaphoreType.DMA((1,))],
            ),
            compiler_params=pltpu.CompilerParams(
                dimension_semantics=("parallel",),   # tiles independent (v7x megacore)
                vmem_limit_bytes=int(min(max(vmem_need, 32 << 20), vmem_limit_cap)),
            ),
        )(ids_flat, weight)

    if N_pad != N:
        out_flat = out_flat[:N]
    return out_flat.reshape(*idx_shape, D)


# --------------------------------------------------------------------------------------
# Self-test
# --------------------------------------------------------------------------------------

if __name__ == "__main__":
    # Small shapes consistent with the PyTorch module.
    num_embeddings = 64
    embedding_dim = 128
    batch, seq = 2, 8

    key = jax.random.PRNGKey(0)
    k_w, k_ids = jax.random.split(key)

    # Mirrors `t.ones(V, D).uniform_(-1, 1)`.
    weight = jax.random.uniform(
        k_w, (num_embeddings, embedding_dim),
        dtype=jnp.float32, minval=-1.0, maxval=1.0,
    )
    ids = jax.random.randint(
        k_ids, (batch, seq), minval=0, maxval=num_embeddings, dtype=jnp.int32
    )

    ref = jnp.take(weight, ids.reshape(-1), axis=0).reshape(batch, seq, embedding_dim)

    def check(name, got, exact):
        got = jax.block_until_ready(got)
        assert got.shape == ref.shape, (name, got.shape)
        assert got.dtype == ref.dtype, (name, got.dtype)
        if exact:
            ok = bool(jnp.array_equal(got, ref))
        else:
            ok = bool(jnp.allclose(got, ref, atol=1e-6, rtol=0.0))
        if not ok:
            raise AssertionError(f"{name}: mismatch vs reference gather")

    # Path 1 (natural for this module): VMEM-resident table + one-hot MXU gather.
    check("onehot/resident", embedding_lookup(ids, weight), exact=False)

    # Path 2 (forced): VMEM-resident table + per-row copy loop (medium-vocab path).
    check("copy/resident", embedding_lookup(ids, weight, onehot_vocab_limit=0),
          exact=True)

    # Path 3 (forced): per-row HBM DMA gather (large-vocab path).
    check("hbm-gather", embedding_lookup(ids, weight, resident_table_bytes=0),
          exact=True)

    print("KERNEL_OK")
</pallas_src>

<mosaic_0001>
module attributes {stable_mosaic.version = 11 : i64} {
  func.func @_embedding_onehot_kernel(%arg0: i32, %arg1: memref<1x1x16xi32, #tpu.memory_space<vmem>>, %arg2: memref<64x128xf32, #tpu.memory_space<any>>, %arg3: memref<16x128xf32, #tpu.memory_space<vmem>>, %arg4: memref<64x128xf32, #tpu.memory_space<vmem>>, %arg5: memref<1x!tpu.dma_semaphore, #tpu.memory_space<semaphore_mem>>) attributes {dimension_semantics = [#tpu.dimension_semantics<arbitrary>], iteration_bounds = array<i64: 1>, scalar_prefetch = 0 : i64, scratch_operands = 2 : i64, tpu.core_type = #tpu.core_type<tc>, window_params = [{transform_indices = @transform_0, window_bounds = array<i64: 1, 1, 16>}, {}, {transform_indices = @transform_2, window_bounds = array<i64: 16, 128>}]} {
    %c0_i32 = arith.constant 0 : i32
    %0 = arith.cmpi eq, %arg0, %c0_i32 : i32
    %1 = arith.extui %0 : i1 to i32
    %c0_i32_0 = arith.constant 0 : i32
    %2 = arith.cmpi ne, %1, %c0_i32_0 : i32
    scf.if %2 {
      %c0_i32_7 = arith.constant 0 : i32
      %13 = tpu.memref_slice %arg5[%c0_i32_7] : memref<1x!tpu.dma_semaphore, #tpu.memory_space<semaphore_mem>> -> memref<1x!tpu.dma_semaphore, #tpu.memory_space<semaphore_mem>>
      %14 = tpu.memref_squeeze %13 : memref<1x!tpu.dma_semaphore, #tpu.memory_space<semaphore_mem>> -> memref<!tpu.dma_semaphore, #tpu.memory_space<semaphore_mem>>
      tpu.enqueue_dma source(%arg2 : memref<64x128xf32, #tpu.memory_space<any>>) target(%arg4 : memref<64x128xf32, #tpu.memory_space<vmem>>) target_semaphore(%14 : memref<!tpu.dma_semaphore, #tpu.memory_space<semaphore_mem>>)
      %c0_i32_8 = arith.constant 0 : i32
      %15 = tpu.memref_slice %arg5[%c0_i32_8] : memref<1x!tpu.dma_semaphore, #tpu.memory_space<semaphore_mem>> -> memref<1x!tpu.dma_semaphore, #tpu.memory_space<semaphore_mem>>
      %16 = tpu.memref_squeeze %15 : memref<1x!tpu.dma_semaphore, #tpu.memory_space<semaphore_mem>> -> memref<!tpu.dma_semaphore, #tpu.memory_space<semaphore_mem>>
      tpu.wait_dma2 semaphore(%16 : memref<!tpu.dma_semaphore, #tpu.memory_space<semaphore_mem>>) src(%arg2 : memref<64x128xf32, #tpu.memory_space<any>>) dst(%arg4 : memref<64x128xf32, #tpu.memory_space<vmem>>)
    } else {
    }
    %c0 = arith.constant 0 : index
    %c0_1 = arith.constant 0 : index
    %c0_2 = arith.constant 0 : index
    %3 = vector.load %arg1[%c0, %c0_1, %c0_2] : memref<1x1x16xi32, #tpu.memory_space<vmem>>, vector<1x1x16xi32>
    %4 = vector.shape_cast %3 : vector<1x1x16xi32> to vector<1x16xi32>
    %5 = tpu.iota {dimensions = array<i32: 0>} : vector<64x16xi32>
    %6 = vector.broadcast %4 : vector<1x16xi32> to vector<64x16xi32>
    %7 = arith.cmpi eq, %5, %6 : vector<64x16xi32>
    %8 = arith.extui %7 : vector<64x16xi1> to vector<64x16xi32>
    %9 = arith.sitofp %8 : vector<64x16xi32> to vector<64x16xf32>
    %c0_3 = arith.constant 0 : index
    %c0_4 = arith.constant 0 : index
    %10 = vector.load %arg4[%c0_3, %c0_4] : memref<64x128xf32, #tpu.memory_space<vmem>>, vector<64x128xf32>
    "tpu.trace_start"() <{level = 10 : i32, message = "vt,vd->td"}> : () -> ()
    %cst = arith.constant dense<0.000000e+00> : vector<16x128xf32>
    %11 = tpu.matmul %9, %10, %cst {dimension_numbers = #tpu.dot_dimension_numbers<[0], [0], [1], [1], [0, 1, 1, 1], [], []>, precision = #tpu.contract_precision<fp32>} : vector<64x16xf32>, vector<64x128xf32>, vector<16x128xf32> -> vector<16x128xf32>
    "tpu.trace_stop"() : () -> ()
    %c0_5 = arith.constant 0 : index
    %c0_6 = arith.constant 0 : index
    %12 = vector.load %arg3[%c0_5, %c0_6] : memref<16x128xf32, #tpu.memory_space<vmem>>, vector<16x128xf32>
    tpu.vector_store %arg3[%c0_5, %c0_6], %11 {strides = array<i32>} : memref<16x128xf32, #tpu.memory_space<vmem>>, vector<16x128xf32>,
    return
  }
  func.func @transform_0(%arg0: i32) -> (i32, i32, i32) {
    %c0_i32 = arith.constant 0 : i32
    %c0_i32_0 = arith.constant 0 : i32
    %c0_i32_1 = arith.constant 0 : i32
    return %arg0, %c0_i32, %c0_i32_0 : i32, i32, i32
  }
  func.func @transform_2(%arg0: i32) -> (i32, i32) {
    %c0_i32 = arith.constant 0 : i32
    %c0_i32_0 = arith.constant 0 : i32
    return %arg0, %c0_i32 : i32, i32
  }
}

</mosaic_0001>

<llo_original>
// kernel: embedding_lookup.1
$region0: #{embedding_lookup.1}
  #allocation0 [shape = 'u32[]', space=smem, size = 0x4, offset = 0x4, fixed_abs, tag = 'smem constant byte address 0x4 - core index']
  #allocation1 [shape = 'u32[144,128]{1,0:T(1,128)}', space=vmem, size = 0x12000, scoped, tag = 'internal scratch']
  #allocation2 [shape = 'f32[64,128]{1,0:T(8,128)}', space=vmem, size = 0x8000, scoped, tag = 'scratch operand']
  #allocation3 [shape = 's32[1]{0}', space=sflag, size = 0x4, scoped, tag = 'scratch operand']
  #allocation6 [shape = 's32[]', space=sflag, size = 0x4, offset = 0, fixed_abs, tag = 'sflag constant byte address 0x0 - dummy sync flag']
  #allocation7 [shape = 's32[]', space=sflag, size = 0x4, offset = 0, fixed_abs, tag = 'sflag constant byte address 0x0 - dummy sync flag']
  #allocation8 [shape = 'u32[]', space=smem, size = 0x4, offset = 0x44, fixed_abs, tag = 'smem constant byte address 0x44 - assertion arg 0']
  #allocation9 [shape = 'u32[]', space=smem, size = 0x4, offset = 0x48, fixed_abs, tag = 'smem constant byte address 0x48 - assertion arg 1']
  %s0 = inlined_call_operand.vmem [shape: s32[1,1,16], index: 0, kind: input, shape index: {}]
  %s1 = inlined_call_operand.hbm [shape: f32[64,128], index: 1, kind: input, shape index: {}]
  %s2 = inlined_call_operand.hbm [shape: f32[16,128], index: 2, kind: output, shape index: {}]
  %s3 = sld [smem:[#allocation0]]
  $region22: #{embedding_lookup.1} parent=0
    _
  %s5 = ssub.s32 1, %s3
  %s6 = scalar_select 0, %s5, %s3
  $region1: #{embedding_lookup.1} parent=0
    #allocation4 [shape = 'u8[8192]{0}', space=vmem, size = 0x2000, scoped, tag = 'output window, operand 0, single buffered']
    #allocation5 [shape = 's32[1]{0}', space=sflag, size = 0x4, scoped, tag = 'scoped memory for embedding_lookup.1']
    %7 = vsyncpa [#allocation5], 0
    // Predicated region
    $region2: #{embedding_lookup.1} parent=1 // pred_check
      _
    $region3: #{embedding_lookup.1} parent=1 // pred_check_branch
      %9 = sbr.rel (0) target = $region5
    $region4: #{embedding_lookup.1} parent=1 // pred_region
      _
    $region5: #{embedding_lookup.1} parent=1 // pred_fallthru
      _
    %p10 = scmp.eq.s32.totalorder 0, 0
    // Predicated region
    $region6: #{embedding_lookup.1} parent=1 // pred_check
      %p11 = pneg %p10
    $region7: #{embedding_lookup.1} parent=1 // pred_check_branch
      %13 = sbr.rel (%p11) target = $region9
    $region8: #{embedding_lookup.1} parent=1 // pred_region
      // Predicated region
      $region10: #{embedding_lookup.1} parent=8 // pred_check
        _
      $region11: #{embedding_lookup.1} parent=8 // pred_check_branch
        %15 = sbr.rel target = $region13
      $region12: #{embedding_lookup.1} parent=8 // pred_region
        %16 = sst [smem:[#allocation8]] [#allocation7]
        %17 = sst [smem:[#allocation9]] [#allocation6]
      $region13: #{embedding_lookup.1} parent=8 // pred_fallthru
        _
      %19 = shalt.err (0)
      %s21 = sshll.u32 [#allocation2], 4
      %s22 = int_to_ptr.vmem [resolvable:$true] %s21
      %24 = dma.hbm_to_vmem [thread:$0]  %s1, 1024, %s22, [#allocation3]
      %s25 = smul.u32 64, 1
      %s26 = sshll.u32 %s25, 4
      %27 = dma.done [#allocation3], %s26
    $region9: #{embedding_lookup.1} parent=1 // pred_fallthru
      _
    %v28 = vld [vmem:[%s0] sm:$0x1]
    %v29 = vlaneseq
    %v30 = vshrl.u32 %v29, 7
    %v31 = vadd.s32 %v30, 8
    %v32 = vadd.s32 %v30, 16
    %v33 = vadd.s32 %v30, 24
    %v34 = vadd.s32 %v30, 32
    %v35 = vadd.s32 %v30, 40
    %v36 = vadd.s32 %v30, 48
    %v37 = vadd.s32 %v30, 56
    %v38 = vlaneseq
    %v39 = vshrl.u32 %v38, 7
    %v40 = vsub.s32 0, %v39
    %v41 = vrot.slane %v28, %v40
    %vm42 = vcmp.eq.s32.totalorder %v30, %v41
    %vm43 = vcmp.eq.s32.totalorder %v31, %v41
    %vm44 = vcmp.eq.s32.totalorder %v32, %v41
    %vm45 = vcmp.eq.s32.totalorder %v33, %v41
    %vm46 = vcmp.eq.s32.totalorder %v34, %v41
    %vm47 = vcmp.eq.s32.totalorder %v35, %v41
    %vm48 = vcmp.eq.s32.totalorder %v36, %v41
    %vm49 = vcmp.eq.s32.totalorder %v37, %v41
    %v50 = vsel %vm42, 1, 0
    %v51 = vsel %vm43, 1, 0
    %v52 = vsel %vm44, 1, 0
    %v53 = vsel %vm45, 1, 0
    %v54 = vsel %vm46, 1, 0
    %v55 = vsel %vm47, 1, 0
    %v56 = vsel %vm48, 1, 0
    %v57 = vsel %vm49, 1, 0
    %v58 = vcvt.s32.f32 %v50
    %v59 = vcvt.s32.f32 %v51
    %v60 = vcvt.s32.f32 %v52
    %v61 = vcvt.s32.f32 %v53
    %v62 = vcvt.s32.f32 %v54
    %v63 = vcvt.s32.f32 %v55
    %v64 = vcvt.s32.f32 %v56
    %v65 = vcvt.s32.f32 %v57
    %v66 = vld [vmem:[#allocation2] sm:$0xff]
    %v67 = vld [vmem:[#allocation2 + $0x8] sm:$0xff]
    %v68 = vld [vmem:[#allocation2 + $0x10] sm:$0xff]
    %v69 = vld [vmem:[#allocation2 + $0x18] sm:$0xff]
    %v70 = vld [vmem:[#allocation2 + $0x20] sm:$0xff]
    %v71 = vld [vmem:[#allocation2 + $0x28] sm:$0xff]
    %v72 = vld [vmem:[#allocation2 + $0x30] sm:$0xff]
    %v73 = vld [vmem:[#allocation2 + $0x38] sm:$0xff]
    %74 = vxpose.xlu0.b32.start [1/16] %v58, 128
    %75 = vxpose.xlu0.b32.cont [2/16] %v59, 128
    %76 = vxpose.xlu0.b32.cont [3/16] %v60, 128
    %77 = vxpose.xlu0.b32.cont [4/16] %v61, 128
    %78 = vxpose.xlu0.b32.cont [5/16] %v62, 128
    %79 = vxpose.xlu0.b32.cont [6/16] %v63, 128
    %80 = vxpose.xlu0.b32.cont [7/16] %v64, 128
    %81 = vxpose.xlu0.b32.cont [8/16] %v65, 128
    %82 = vxpose.xlu0.b32.cont [9/16] 0.0, 128
    %83 = vxpose.xlu0.b32.cont [10/16] 0.0, 128
    %84 = vxpose.xlu0.b32.cont [11/16] 0.0, 128
    %85 = vxpose.xlu0.b32.cont [12/16] 0.0, 128
    %86 = vxpose.xlu0.b32.cont [13/16] 0.0, 128
    %87 = vxpose.xlu0.b32.cont [14/16] 0.0, 128
    %88 = vxpose.xlu0.b32.cont [15/16] 0.0, 128
    %89 = vxpose.xlu0.b32.end [16/16] 0.0, 128
    %v90 = vpop.trf.xlu0
    %v91 = vpop.trf.xlu0
    %v92 = vpop.trf.xlu0
    %v93 = vpop.trf.xlu0
    %v94 = vpop.trf.xlu0
    %v95 = vpop.trf.xlu0
    %v96 = vpop.trf.xlu0
    %v97 = vpop.trf.xlu0
    %v98 = vpop.trf.xlu0
    %v99 = vpop.trf.xlu0
    %v100 = vpop.trf.xlu0
    %v101 = vpop.trf.xlu0
    %v102 = vpop.trf.xlu0
    %v103 = vpop.trf.xlu0
    %v104 = vpop.trf.xlu0
    %v105 = vpop.trf.xlu0
    %vm106 = vcmask 523264
    %v108 = vsel %vm106, %v90, 0
    %v111 = vsel %vm106, %v91, 0
    %113 = vmatprep.subr.mxu0 0.0
    %114 = vmatpush1.msra.mxu0 0.0
    %115 = vmatprep.subr.mxu0 0.0
    %116 = vmatpush1.msra.mxu0 0.0
    %117 = vmatprep.subr.mxu0 0.0
    %118 = vmatpush1.msra.mxu0 0.0
    %119 = vmatprep.subr.mxu0 0.0
    %120 = vmatpush1.msra.mxu0 0.0
    %121 = vmatprep.subr.mxu0 0.0
    %122 = vmatpush1.msra.mxu0 0.0
    %123 = vmatprep.subr.mxu0 0.0
    %124 = vmatpush1.msra.mxu0 0.0
    %125 = vmatprep.subr.mxu0 0.0
    %126 = vmatpush1.msra.mxu0 0.0
    %127 = vmatprep.subr.mxu0 0.0
    %128 = vmatpush1.msra.mxu0 0.0
    %129 = vmatprep.subr.mxu0 0.0
    %v130 = vand.u32 %v73, 4294901760
    %131 = vmatpush1.msra.mxu0 %v130
    %132 = vmatprep.subr.mxu0 0.0
    %v133 = vand.u32 %v72, 4294901760
    %134 = vmatpush1.msra.mxu0 %v133
    %135 = vmatprep.subr.mxu0 0.0
    %v136 = vand.u32 %v71, 4294901760
    %137 = vmatpush1.msra.mxu0 %v136
    %138 = vmatprep.subr.mxu0 0.0
    %v139 = vand.u32 %v70, 4294901760
    %140 = vmatpush1.msra.mxu0 %v139
    %141 = vmatprep.subr.mxu0 0.0
    %v142 = vand.u32 %v69, 4294901760
    %143 = vmatpush1.msra.mxu0 %v142
    %144 = vmatprep.subr.mxu0 0.0
    %v145 = vand.u32 %v68, 4294901760
    %146 = vmatpush1.msra.mxu0 %v145
    %147 = vmatprep.subr.mxu0 0.0
    %v148 = vand.u32 %v67, 4294901760
    %149 = vmatpush1.msra.mxu0 %v148
    %150 = vmatprep.subr.mxu0 0.0
    %v151 = vand.u32 %v66, 4294901760
    %152 = vmatpush1.msra.mxu0 %v151
    %153 = vmatprep.subr.mxu0 0.0
    %154 = vmatpush2.msra.mxu0 0.0
    %155 = vmatprep.subr.mxu0 0.0
    %156 = vmatpush2.msra.mxu0 0.0
    %157 = vmatprep.subr.mxu0 0.0
    %158 = vmatpush2.msra.mxu0 0.0
    %159 = vmatprep.subr.mxu0 0.0
    %160 = vmatpush2.msra.mxu0 0.0
    %161 = vmatprep.subr.mxu0 0.0
    %162 = vmatpush2.msra.mxu0 0.0
    %163 = vmatprep.subr.mxu0 0.0
    %164 = vmatpush2.msra.mxu0 0.0
    %165 = vmatprep.subr.mxu0 0.0
    %166 = vmatpush2.msra.mxu0 0.0
    %167 = vmatprep.subr.mxu0 0.0
    %168 = vmatpush2.msra.mxu0 0.0
    %169 = vmatprep.subr.mxu0 0.0
    %170 = vmatpush2.msra.mxu0 0.0
    %171 = vmatprep.subr.mxu0 0.0
    %172 = vmatpush2.msra.mxu0 0.0
    %173 = vmatprep.subr.mxu0 0.0
    %174 = vmatpush2.msra.mxu0 0.0
    %175 = vmatprep.subr.mxu0 0.0
    %176 = vmatpush2.msra.mxu0 0.0
    %177 = vmatprep.subr.mxu0 0.0
    %178 = vmatpush2.msra.mxu0 0.0
    %179 = vmatprep.subr.mxu0 0.0
    %180 = vmatpush2.msra.mxu0 0.0
    %181 = vmatprep.subr.mxu0 0.0
    %182 = vmatpush2.msra.mxu0 0.0
    %183 = vmatprep.subr.mxu0 0.0
    %184 = vmatpush2.msra.mxu0 0.0
    %185 = vmatprep.mubr.f32.mxu0 0.0
    %v186 = vand.u32 %v108, 4294901760
    %v187 = vsub.f32 %v108, %v186
    %v188 = vand.u32 %v187, 4294901760
    %v189 = vsub.f32 %v187, %v188
    %v190 = vand.u32 %v189, 4294901760
    %191 = vmatmul.mubr.f32.gmra.mxu0 %v190
    %v192 = vpop.f32.mrf.mxu0
    %v193 = vadd.f32 0.0, %v192
    %v194 = vpop.f32.mrf.mxu0
    %195 = vmatprep.mubr.f32.mxu0 0.0
    %v196 = vand.u32 %v111, 4294901760
    %v197 = vsub.f32 %v111, %v196
    %v198 = vand.u32 %v197, 4294901760
    %v199 = vsub.f32 %v197, %v198
    %v200 = vand.u32 %v199, 4294901760
    %201 = vmatmul.mubr.f32.gmra.mxu0 %v200
    %v202 = vpop.f32.mrf.mxu0
    %v203 = vadd.f32 0.0, %v202
    %v204 = vpop.f32.mrf.mxu0
    %205 = vdwg.mxu0
    %206 = vmatprep.subr.mxu0 0.0
    %207 = vmatpush1.msra.mxu0 0.0
    %208 = vmatprep.subr.mxu0 0.0
    %209 = vmatpush1.msra.mxu0 0.0
    %210 = vmatprep.subr.mxu0 0.0
    %211 = vmatpush1.msra.mxu0 0.0
    %212 = vmatprep.subr.mxu0 0.0
    %213 = vmatpush1.msra.mxu0 0.0
    %214 = vmatprep.subr.mxu0 0.0
    %215 = vmatpush1.msra.mxu0 0.0
    %216 = vmatprep.subr.mxu0 0.0
    %217 = vmatpush1.msra.mxu0 0.0
    %218 = vmatprep.subr.mxu0 0.0
    %219 = vmatpush1.msra.mxu0 0.0
    %220 = vmatprep.subr.mxu0 0.0
    %221 = vmatpush1.msra.mxu0 0.0
    %222 = vmatprep.subr.mxu0 0.0
    %v223 = vand.u32 %v73, 4294901760
    %v224 = vsub.f32 %v73, %v223
    %v225 = vand.u32 %v224, 4294901760
    %v226 = vsub.f32 %v224, %v225
    %v227 = vand.u32 %v226, 4294901760
    %228 = vmatpush1.msra.mxu0 %v227
    %229 = vmatprep.subr.mxu0 0.0
    %v230 = vand.u32 %v72, 4294901760
    %v231 = vsub.f32 %v72, %v230
    %v232 = vand.u32 %v231, 4294901760
    %v233 = vsub.f32 %v231, %v232
    %v234 = vand.u32 %v233, 4294901760
    %235 = vmatpush1.msra.mxu0 %v234
    %236 = vmatprep.subr.mxu0 0.0
    %v237 = vand.u32 %v71, 4294901760
    %v238 = vsub.f32 %v71, %v237
    %v239 = vand.u32 %v238, 4294901760
    %v240 = vsub.f32 %v238, %v239
    %v241 = vand.u32 %v240, 4294901760
    %242 = vmatpush1.msra.mxu0 %v241
    %243 = vmatprep.subr.mxu0 0.0
    %v244 = vand.u32 %v70, 4294901760
    %v245 = vsub.f32 %v70, %v244
    %v246 = vand.u32 %v245, 4294901760
    %v247 = vsub.f32 %v245, %v246
    %v248 = vand.u32 %v247, 4294901760
    %249 = vmatpush1.msra.mxu0 %v248
    %250 = vmatprep.subr.mxu0 0.0
    %v251 = vand.u32 %v69, 4294901760
    %v252 = vsub.f32 %v69, %v251
    %v253 = vand.u32 %v252, 4294901760
    %v254 = vsub.f32 %v252, %v253
    %v255 = vand.u32 %v254, 4294901760
    %256 = vmatpush1.msra.mxu0 %v255
    %257 = vmatprep.subr.mxu0 0.0
    %v258 = vand.u32 %v68, 4294901760
    %v259 = vsub.f32 %v68, %v258
    %v260 = vand.u32 %v259, 4294901760
    %v261 = vsub.f32 %v259, %v260
    %v262 = vand.u32 %v261, 4294901760
    %263 = vmatpush1.msra.mxu0 %v262
    %264 = vmatprep.subr.mxu0 0.0
    %v265 = vand.u32 %v67, 4294901760
    %v266 = vsub.f32 %v67, %v265
    %v267 = vand.u32 %v266, 4294901760
    %v268 = vsub.f32 %v266, %v267
    %v269 = vand.u32 %v268, 4294901760
    %270 = vmatpush1.msra.mxu0 %v269
    %271 = vmatprep.subr.mxu0 0.0
    %v272 = vand.u32 %v66, 4294901760
    %v273 = vsub.f32 %v66, %v272
    %v274 = vand.u32 %v273, 4294901760
    %v275 = vsub.f32 %v273, %v274
    %v276 = vand.u32 %v275, 4294901760
    %277 = vmatpush1.msra.mxu0 %v276
    %278 = vmatprep.subr.mxu0 0.0
    %279 = vmatpush2.msra.mxu0 0.0
    %280 = vmatprep.subr.mxu0 0.0
    %281 = vmatpush2.msra.mxu0 0.0
    %282 = vmatprep.subr.mxu0 0.0
    %283 = vmatpush2.msra.mxu0 0.0
    %284 = vmatprep.subr.mxu0 0.0
    %285 = vmatpush2.msra.mxu0 0.0
    %286 = vmatprep.subr.mxu0 0.0
    %287 = vmatpush2.msra.mxu0 0.0
    %288 = vmatprep.subr.mxu0 0.0
    %289 = vmatpush2.msra.mxu0 0.0
    %290 = vmatprep.subr.mxu0 0.0
    %291 = vmatpush2.msra.mxu0 0.0
    %292 = vmatprep.subr.mxu0 0.0
    %293 = vmatpush2.msra.mxu0 0.0
    %294 = vmatprep.subr.mxu0 0.0
    %295 = vmatpush2.msra.mxu0 0.0
    %296 = vmatprep.subr.mxu0 0.0
    %297 = vmatpush2.msra.mxu0 0.0
    %298 = vmatprep.subr.mxu0 0.0
    %299 = vmatpush2.msra.mxu0 0.0
    %300 = vmatprep.subr.mxu0 0.0
    %301 = vmatpush2.msra.mxu0 0.0
    %302 = vmatprep.subr.mxu0 0.0
    %303 = vmatpush2.msra.mxu0 0.0
    %304 = vmatprep.subr.mxu0 0.0
    %305 = vmatpush2.msra.mxu0 0.0
    %306 = vmatprep.subr.mxu0 0.0
    %307 = vmatpush2.msra.mxu0 0.0
    %308 = vmatprep.subr.mxu0 0.0
    %309 = vmatpush2.msra.mxu0 0.0
    %310 = vmatprep.mubr.f32.mxu0 0.0
    %v311 = vand.u32 %v108, 4294901760
    %312 = vmatmul.mubr.f32.gmra.mxu0 %v311
    %v313 = vpop.f32.mrf.mxu0
    %v314 = vadd.f32 %v193, %v313
    %v315 = vpop.f32.mrf.mxu0
    %316 = vmatprep.mubr.f32.mxu0 0.0
    %v317 = vand.u32 %v111, 4294901760
    %318 = vmatmul.mubr.f32.gmra.mxu0 %v317
    %v319 = vpop.f32.mrf.mxu0
    %v320 = vadd.f32 %v203, %v319
    %v321 = vpop.f32.mrf.mxu0
    %322 = vdwg.mxu0
    %323 = vmatprep.subr.mxu0 0.0
    %324 = vmatpush1.msra.mxu0 0.0
    %325 = vmatprep.subr.mxu0 0.0
    %326 = vmatpush1.msra.mxu0 0.0
    %327 = vmatprep.subr.mxu0 0.0
    %328 = vmatpush1.msra.mxu0 0.0
    %329 = vmatprep.subr.mxu0 0.0
    %330 = vmatpush1.msra.mxu0 0.0
    %331 = vmatprep.subr.mxu0 0.0
    %332 = vmatpush1.msra.mxu0 0.0
    %333 = vmatprep.subr.mxu0 0.0
    %334 = vmatpush1.msra.mxu0 0.0
    %335 = vmatprep.subr.mxu0 0.0
    %336 = vmatpush1.msra.mxu0 0.0
    %337 = vmatprep.subr.mxu0 0.0
    %338 = vmatpush1.msra.mxu0 0.0
    %339 = vmatprep.subr.mxu0 0.0
    %v340 = vand.u32 %v73, 4294901760
    %v341 = vsub.f32 %v73, %v340
    %342 = vmatpush1.msra.mxu0 %v341
    %343 = vmatprep.subr.mxu0 0.0
    %v344 = vand.u32 %v72, 4294901760
    %v345 = vsub.f32 %v72, %v344
    %346 = vmatpush1.msra.mxu0 %v345
    %347 = vmatprep.subr.mxu0 0.0
    %v348 = vand.u32 %v71, 4294901760
    %v349 = vsub.f32 %v71, %v348
    %350 = vmatpush1.msra.mxu0 %v349
    %351 = vmatprep.subr.mxu0 0.0
    %v352 = vand.u32 %v70, 4294901760
    %v353 = vsub.f32 %v70, %v352
    %354 = vmatpush1.msra.mxu0 %v353
    %355 = vmatprep.subr.mxu0 0.0
    %v356 = vand.u32 %v69, 4294901760
    %v357 = vsub.f32 %v69, %v356
    %358 = vmatpush1.msra.mxu0 %v357
    %359 = vmatprep.subr.mxu0 0.0
    %v360 = vand.u32 %v68, 4294901760
    %v361 = vsub.f32 %v68, %v360
    %362 = vmatpush1.msra.mxu0 %v361
    %363 = vmatprep.subr.mxu0 0.0
    %v364 = vand.u32 %v67, 4294901760
    %v365 = vsub.f32 %v67, %v364
    %366 = vmatpush1.msra.mxu0 %v365
    %367 = vmatprep.subr.mxu0 0.0
    %v368 = vand.u32 %v66, 4294901760
    %v369 = vsub.f32 %v66, %v368
    %370 = vmatpush1.msra.mxu0 %v369
    %371 = vmatprep.subr.mxu0 0.0
    %372 = vmatpush2.msra.mxu0 0.0
    %373 = vmatprep.subr.mxu0 0.0
    %374 = vmatpush2.msra.mxu0 0.0
    %375 = vmatprep.subr.mxu0 0.0
    %376 = vmatpush2.msra.mxu0 0.0
    %377 = vmatprep.subr.mxu0 0.0
    %378 = vmatpush2.msra.mxu0 0.0
    %379 = vmatprep.subr.mxu0 0.0
    %380 = vmatpush2.msra.mxu0 0.0
    %381 = vmatprep.subr.mxu0 0.0
    %382 = vmatpush2.msra.mxu0 0.0
    %383 = vmatprep.subr.mxu0 0.0
    %384 = vmatpush2.msra.mxu0 0.0
    %385 = vmatprep.subr.mxu0 0.0
    %386 = vmatpush2.msra.mxu0 0.0
    %387 = vmatprep.subr.mxu0 0.0
    %388 = vmatpush2.msra.mxu0 0.0
    %389 = vmatprep.subr.mxu0 0.0
    %390 = vmatpush2.msra.mxu0 0.0
    %391 = vmatprep.subr.mxu0 0.0
    %392 = vmatpush2.msra.mxu0 0.0
    %393 = vmatprep.subr.mxu0 0.0
    %394 = vmatpush2.msra.mxu0 0.0
    %395 = vmatprep.subr.mxu0 0.0
    %396 = vmatpush2.msra.mxu0 0.0
    %397 = vmatprep.subr.mxu0 0.0
    %398 = vmatpush2.msra.mxu0 0.0
    %399 = vmatprep.subr.mxu0 0.0
    %400 = vmatpush2.msra.mxu0 0.0
    %401 = vmatprep.subr.mxu0 0.0
    %402 = vmatpush2.msra.mxu0 0.0
    %403 = vmatprep.mubr.f32.mxu0 0.0
    %v404 = vand.u32 %v108, 4294901760
    %v405 = vsub.f32 %v108, %v404
    %406 = vmatmul.mubr.f32.gmra.mxu0 %v405
    %v407 = vpop.f32.mrf.mxu0
    %v408 = vadd.f32 %v314, %v407
    %v409 = vpop.f32.mrf.mxu0
    %410 = vmatprep.mubr.f32.mxu0 0.0
    %v411 = vand.u32 %v111, 4294901760
    %v412 = vsub.f32 %v111, %v411
    %413 = vmatmul.mubr.f32.gmra.mxu0 %v412
    %v414 = vpop.f32.mrf.mxu0
    %v415 = vadd.f32 %v320, %v414
    %v416 = vpop.f32.mrf.mxu0
    %417 = vdwg.mxu0
    %418 = vmatprep.subr.mxu0 0.0
    %419 = vmatpush1.msra.mxu0 0.0
    %420 = vmatprep.subr.mxu0 0.0
    %421 = vmatpush1.msra.mxu0 0.0
    %422 = vmatprep.subr.mxu0 0.0
    %423 = vmatpush1.msra.mxu0 0.0
    %424 = vmatprep.subr.mxu0 0.0
    %425 = vmatpush1.msra.mxu0 0.0
    %426 = vmatprep.subr.mxu0 0.0
    %427 = vmatpush1.msra.mxu0 0.0
    %428 = vmatprep.subr.mxu0 0.0
    %429 = vmatpush1.msra.mxu0 0.0
    %430 = vmatprep.subr.mxu0 0.0
    %431 = vmatpush1.msra.mxu0 0.0
    %432 = vmatprep.subr.mxu0 0.0
    %433 = vmatpush1.msra.mxu0 0.0
    %434 = vmatprep.subr.mxu0 0.0
    %v435 = vand.u32 %v73, 4294901760
    %436 = vmatpush1.msra.mxu0 %v435
    %437 = vmatprep.subr.mxu0 0.0
    %v438 = vand.u32 %v72, 4294901760
    %439 = vmatpush1.msra.mxu0 %v438
    %440 = vmatprep.subr.mxu0 0.0
    %v441 = vand.u32 %v71, 4294901760
    %442 = vmatpush1.msra.mxu0 %v441
    %443 = vmatprep.subr.mxu0 0.0
    %v444 = vand.u32 %v70, 4294901760
    %445 = vmatpush1.msra.mxu0 %v444
    %446 = vmatprep.subr.mxu0 0.0
    %v447 = vand.u32 %v69, 4294901760
    %448 = vmatpush1.msra.mxu0 %v447
    %449 = vmatprep.subr.mxu0 0.0
    %v450 = vand.u32 %v68, 4294901760
    %451 = vmatpush1.msra.mxu0 %v450
    %452 = vmatprep.subr.mxu0 0.0
    %v453 = vand.u32 %v67, 4294901760
    %454 = vmatpush1.msra.mxu0 %v453
    %455 = vmatprep.subr.mxu0 0.0
    %v456 = vand.u32 %v66, 4294901760
    %457 = vmatpush1.msra.mxu0 %v456
    %458 = vmatprep.subr.mxu0 0.0
    %459 = vmatpush2.msra.mxu0 0.0
    %460 = vmatprep.subr.mxu0 0.0
    %461 = vmatpush2.msra.mxu0 0.0
    %462 = vmatprep.subr.mxu0 0.0
    %463 = vmatpush2.msra.mxu0 0.0
    %464 = vmatprep.subr.mxu0 0.0
    %465 = vmatpush2.msra.mxu0 0.0
    %466 = vmatprep.subr.mxu0 0.0
    %467 = vmatpush2.msra.mxu0 0.0
    %468 = vmatprep.subr.mxu0 0.0
    %469 = vmatpush2.msra.mxu0 0.0
    %470 = vmatprep.subr.mxu0 0.0
    %471 = vmatpush2.msra.mxu0 0.0
    %472 = vmatprep.subr.mxu0 0.0
    %473 = vmatpush2.msra.mxu0 0.0
    %474 = vmatprep.subr.mxu0 0.0
    %475 = vmatpush2.msra.mxu0 0.0
    %476 = vmatprep.subr.mxu0 0.0
    %477 = vmatpush2.msra.mxu0 0.0
    %478 = vmatprep.subr.mxu0 0.0
    %479 = vmatpush2.msra.mxu0 0.0
    %480 = vmatprep.subr.mxu0 0.0
    %481 = vmatpush2.msra.mxu0 0.0
    %482 = vmatprep.subr.mxu0 0.0
    %483 = vmatpush2.msra.mxu0 0.0
    %484 = vmatprep.subr.mxu0 0.0
    %485 = vmatpush2.msra.mxu0 0.0
    %486 = vmatprep.subr.mxu0 0.0
    %487 = vmatpush2.msra.mxu0 0.0
    %488 = vmatprep.subr.mxu0 0.0
    %489 = vmatpush2.msra.mxu0 0.0
    %490 = vmatprep.mubr.f32.mxu0 0.0
    %v491 = vand.u32 %v108, 4294901760
    %v492 = vsub.f32 %v108, %v491
    %v493 = vand.u32 %v492, 4294901760
    %494 = vmatmul.mubr.f32.gmra.mxu0 %v493
    %v495 = vpop.f32.mrf.mxu0
    %v496 = vadd.f32 %v408, %v495
    %v497 = vpop.f32.mrf.mxu0
    %498 = vmatprep.mubr.f32.mxu0 0.0
    %v499 = vand.u32 %v111, 4294901760
    %v500 = vsub.f32 %v111, %v499
    %v501 = vand.u32 %v500, 4294901760
    %502 = vmatmul.mubr.f32.gmra.mxu0 %v501
    %v503 = vpop.f32.mrf.mxu0
    %v504 = vadd.f32 %v415, %v503
    %v505 = vpop.f32.mrf.mxu0
    %506 = vdwg.mxu0
    %507 = vmatprep.subr.mxu0 0.0
    %508 = vmatpush1.msra.mxu0 0.0
    %509 = vmatprep.subr.mxu0 0.0
    %510 = vmatpush1.msra.mxu0 0.0
    %511 = vmatprep.subr.mxu0 0.0
    %512 = vmatpush1.msra.mxu0 0.0
    %513 = vmatprep.subr.mxu0 0.0
    %514 = vmatpush1.msra.mxu0 0.0
    %515 = vmatprep.subr.mxu0 0.0
    %516 = vmatpush1.msra.mxu0 0.0
    %517 = vmatprep.subr.mxu0 0.0
    %518 = vmatpush1.msra.mxu0 0.0
    %519 = vmatprep.subr.mxu0 0.0
    %520 = vmatpush1.msra.mxu0 0.0
    %521 = vmatprep.subr.mxu0 0.0
    %522 = vmatpush1.msra.mxu0 0.0
    %523 = vmatprep.subr.mxu0 0.0
    %v524 = vand.u32 %v73, 4294901760
    %v525 = vsub.f32 %v73, %v524
    %v526 = vand.u32 %v525, 4294901760
    %527 = vmatpush1.msra.mxu0 %v526
    %528 = vmatprep.subr.mxu0 0.0
    %v529 = vand.u32 %v72, 4294901760
    %v530 = vsub.f32 %v72, %v529
    %v531 = vand.u32 %v530, 4294901760
    %532 = vmatpush1.msra.mxu0 %v531
    %533 = vmatprep.subr.mxu0 0.0
    %v534 = vand.u32 %v71, 4294901760
    %v535 = vsub.f32 %v71, %v534
    %v536 = vand.u32 %v535, 4294901760
    %537 = vmatpush1.msra.mxu0 %v536
    %538 = vmatprep.subr.mxu0 0.0
    %v539 = vand.u32 %v70, 4294901760
    %v540 = vsub.f32 %v70, %v539
    %v541 = vand.u32 %v540, 4294901760
    %542 = vmatpush1.msra.mxu0 %v541
    %543 = vmatprep.subr.mxu0 0.0
    %v544 = vand.u32 %v69, 4294901760
    %v545 = vsub.f32 %v69, %v544
    %v546 = vand.u32 %v545, 4294901760
    %547 = vmatpush1.msra.mxu0 %v546
    %548 = vmatprep.subr.mxu0 0.0
    %v549 = vand.u32 %v68, 4294901760
    %v550 = vsub.f32 %v68, %v549
    %v551 = vand.u32 %v550, 4294901760
    %552 = vmatpush1.msra.mxu0 %v551
    %553 = vmatprep.subr.mxu0 0.0
    %v554 = vand.u32 %v67, 4294901760
    %v555 = vsub.f32 %v67, %v554
    %v556 = vand.u32 %v555, 4294901760
    %557 = vmatpush1.msra.mxu0 %v556
    %558 = vmatprep.subr.mxu0 0.0
    %v559 = vand.u32 %v66, 4294901760
    %v560 = vsub.f32 %v66, %v559
    %v561 = vand.u32 %v560, 4294901760
    %562 = vmatpush1.msra.mxu0 %v561
    %563 = vmatprep.subr.mxu0 0.0
    %564 = vmatpush2.msra.mxu0 0.0
    %565 = vmatprep.subr.mxu0 0.0
    %566 = vmatpush2.msra.mxu0 0.0
    %567 = vmatprep.subr.mxu0 0.0
    %568 = vmatpush2.msra.mxu0 0.0
    %569 = vmatprep.subr.mxu0 0.0
    %570 = vmatpush2.msra.mxu0 0.0
    %571 = vmatprep.subr.mxu0 0.0
    %572 = vmatpush2.msra.mxu0 0.0
    %573 = vmatprep.subr.mxu0 0.0
    %574 = vmatpush2.msra.mxu0 0.0
    %575 = vmatprep.subr.mxu0 0.0
    %576 = vmatpush2.msra.mxu0 0.0
    %577 = vmatprep.subr.mxu0 0.0
    %578 = vmatpush2.msra.mxu0 0.0
    %579 = vmatprep.subr.mxu0 0.0
    %580 = vmatpush2.msra.mxu0 0.0
    %581 = vmatprep.subr.mxu0 0.0
    %582 = vmatpush2.msra.mxu0 0.0
    %583 = vmatprep.subr.mxu0 0.0
    %584 = vmatpush2.msra.mxu0 0.0
    %585 = vmatprep.subr.mxu0 0.0
    %586 = vmatpush2.msra.mxu0 0.0
    %587 = vmatprep.subr.mxu0 0.0
    %588 = vmatpush2.msra.mxu0 0.0
    %589 = vmatprep.subr.mxu0 0.0
    %590 = vmatpush2.msra.mxu0 0.0
    %591 = vmatprep.subr.mxu0 0.0
    %592 = vmatpush2.msra.mxu0 0.0
    %593 = vmatprep.subr.mxu0 0.0
    %594 = vmatpush2.msra.mxu0 0.0
    %595 = vmatprep.mubr.f32.mxu0 0.0
    %v596 = vand.u32 %v108, 4294901760
    %597 = vmatmul.mubr.f32.gmra.mxu0 %v596
    %v598 = vpop.f32.mrf.mxu0
    %v599 = vadd.f32 %v496, %v598
    %v600 = vpop.f32.mrf.mxu0
    %601 = vmatprep.mubr.f32.mxu0 0.0
    %v602 = vand.u32 %v111, 4294901760
    %603 = vmatmul.mubr.f32.gmra.mxu0 %v602
    %v604 = vpop.f32.mrf.mxu0
    %v605 = vadd.f32 %v504, %v604
    %v606 = vpop.f32.mrf.mxu0
    %607 = vdwg.mxu0
    %608 = vmatprep.subr.mxu0 0.0
    %609 = vmatpush1.msra.mxu0 0.0
    %610 = vmatprep.subr.mxu0 0.0
    %611 = vmatpush1.msra.mxu0 0.0
    %612 = vmatprep.subr.mxu0 0.0
    %613 = vmatpush1.msra.mxu0 0.0
    %614 = vmatprep.subr.mxu0 0.0
    %615 = vmatpush1.msra.mxu0 0.0
    %616 = vmatprep.subr.mxu0 0.0
    %617 = vmatpush1.msra.mxu0 0.0
    %618 = vmatprep.subr.mxu0 0.0
    %619 = vmatpush1.msra.mxu0 0.0
    %620 = vmatprep.subr.mxu0 0.0
    %621 = vmatpush1.msra.mxu0 0.0
    %622 = vmatprep.subr.mxu0 0.0
    %623 = vmatpush1.msra.mxu0 0.0
    %624 = vmatprep.subr.mxu0 0.0
    %v625 = vand.u32 %v73, 4294901760
    %626 = vmatpush1.msra.mxu0 %v625
    %627 = vmatprep.subr.mxu0 0.0
    %v628 = vand.u32 %v72, 4294901760
    %629 = vmatpush1.msra.mxu0 %v628
    %630 = vmatprep.subr.mxu0 0.0
    %v631 = vand.u32 %v71, 4294901760
    %632 = vmatpush1.msra.mxu0 %v631
    %633 = vmatprep.subr.mxu0 0.0
    %v634 = vand.u32 %v70, 4294901760
    %635 = vmatpush1.msra.mxu0 %v634
    %636 = vmatprep.subr.mxu0 0.0
    %v637 = vand.u32 %v69, 4294901760
    %638 = vmatpush1.msra.mxu0 %v637
    %639 = vmatprep.subr.mxu0 0.0
    %v640 = vand.u32 %v68, 4294901760
    %641 = vmatpush1.msra.mxu0 %v640
    %642 = vmatprep.subr.mxu0 0.0
    %v643 = vand.u32 %v67, 4294901760
    %644 = vmatpush1.msra.mxu0 %v643
    %645 = vmatprep.subr.mxu0 0.0
    %v646 = vand.u32 %v66, 4294901760
    %647 = vmatpush1.msra.mxu0 %v646
    %648 = vmatprep.subr.mxu0 0.0
    %649 = vmatpush2.msra.mxu0 0.0
    %650 = vmatprep.subr.mxu0 0.0
    %651 = vmatpush2.msra.mxu0 0.0
    %652 = vmatprep.subr.mxu0 0.0
    %653 = vmatpush2.msra.mxu0 0.0
    %654 = vmatprep.subr.mxu0 0.0
    %655 = vmatpush2.msra.mxu0 0.0
    %656 = vmatprep.subr.mxu0 0.0
    %657 = vmatpush2.msra.mxu0 0.0
    %658 = vmatprep.subr.mxu0 0.0
    %659 = vmatpush2.msra.mxu0 0.0
    %660 = vmatprep.subr.mxu0 0.0
    %661 = vmatpush2.msra.mxu0 0.0
    %662 = vmatprep.subr.mxu0 0.0
    %663 = vmatpush2.msra.mxu0 0.0
    %664 = vmatprep.subr.mxu0 0.0
    %665 = vmatpush2.msra.mxu0 0.0
    %666 = vmatprep.subr.mxu0 0.0
    %667 = vmatpush2.msra.mxu0 0.0
    %668 = vmatprep.subr.mxu0 0.0
    %669 = vmatpush2.msra.mxu0 0.0
    %670 = vmatprep.subr.mxu0 0.0
    %671 = vmatpush2.msra.mxu0 0.0
    %672 = vmatprep.subr.mxu0 0.0
    %673 = vmatpush2.msra.mxu0 0.0
    %674 = vmatprep.subr.mxu0 0.0
    %675 = vmatpush2.msra.mxu0 0.0
    %676 = vmatprep.subr.mxu0 0.0
    %677 = vmatpush2.msra.mxu0 0.0
    %678 = vmatprep.subr.mxu0 0.0
    %679 = vmatpush2.msra.mxu0 0.0
    %680 = vmatprep.mubr.f32.mxu0 0.0
    %v681 = vand.u32 %v108, 4294901760
    %682 = vmatmul.mubr.f32.gmra.mxu0 %v681
    %v683 = vpop.f32.mrf.mxu0
    %v684 = vadd.f32 %v599, %v683
    %v685 = vpop.f32.mrf.mxu0
    %686 = vmatprep.mubr.f32.mxu0 0.0
    %v687 = vand.u32 %v111, 4294901760
    %688 = vmatmul.mubr.f32.gmra.mxu0 %v687
    %v689 = vpop.f32.mrf.mxu0
    %v690 = vadd.f32 %v605, %v689
    %v691 = vpop.f32.mrf.mxu0
    %692 = vdwg.mxu0
    %693 = vst [vmem:[#allocation4] sm:$0xff] %v684
    %694 = vst [vmem:[#allocation4 + $0x8] sm:$0xff] %v690
    // Predicated region
    $region14: #{embedding_lookup.1} parent=1 // pred_check
      _
    $region15: #{embedding_lookup.1} parent=1 // pred_check_branch
      %696 = sbr.rel (0) target = $region17
    $region16: #{embedding_lookup.1} parent=1 // pred_region
      %s698 = ssub.s32 256, 256
      %699 = vsyncadd [#allocation5], %s698
      %s700 = sshll.u32 [#allocation4], 4
      %s701 = int_to_ptr.vmem [resolvable:$true] %s700
      %706 = dma.vmem_to_hbm [thread:$0]  %s701, 256, %s2, [#allocation5], 128, 128, 8
    $region17: #{embedding_lookup.1} parent=1 // pred_fallthru
      _
    // Predicated region
    $region18: #{embedding_lookup.1} parent=1 // pred_check
      _
    $region19: #{embedding_lookup.1} parent=1 // pred_check_branch
      %708 = sbr.rel (0) target = $region21
    $region20: #{embedding_lookup.1} parent=1 // pred_region
      %709 = dma.done [#allocation5], 256
    $region21: #{embedding_lookup.1} parent=1 // pred_fallthru
      _
    %710 = vsyncpa [#allocation5], 1
  %711 = vsyncmov [#allocation3]
  %s712 = vpop.sfrf %711
  %p713 = scmp.eq.s32.totalorder %s712, 0
  %p714 = pneg %p713
  %716 = shalt.err (%p714)

</llo_original>
